<compile_context>
chip_gen: v5e
topology: v5e:2x2
jax: 0.10.0
libtpu: 0.0.40
codegen_flags: <defaults>
</compile_context>

<pallas_src>
import functools

import jax
import jax.numpy as jnp
import numpy as np
from jax.experimental import pallas as pl
from jax.experimental.pallas import tpu as pltpu


def edge_kernel(x_ref, w1_ref, b1_ref, w2_ref, b2_ref, mask_ref, o_ref, *, H, W, nb):
    """Fused conv3x3 -> ReLU -> conv3x3 -> sigmoid for `nb` images.

    x_ref   : (nb, Cin, LE)   channel-major padded-flat input (LE lanes)
    w1_ref  : (9*C1, Cin)     conv1 weights, row = tap*C1 + c1   (tap = ky*3+kx)
    b1_ref  : (C1, 1)         conv1 bias (f32)
    w2_ref  : (9, C1)         conv2 weights (C2 == 1), row = tap
    b2_ref  : (1, 1)          conv2 bias (f32)
    mask_ref: (1, P)          1.0 on interior pixels of the padded-flat layout
    o_ref   : (nb, 1, LOUT)   lane-dense output rows (f32)
    """
    Wp = W + 2
    P = (H + 2) * Wp                 # padded-flat image length
    margin = Wp + 1                  # extra zero lanes on each side of the input
    lout = (H - 1) * Wp + W          # span covering all valid output centers
    c1 = b1_ref.shape[0]
    # tap offsets in padded-flat coordinates (tap = ky*3 + kx)
    offs = [dy * Wp + dx for dy in (-1, 0, 1) for dx in (-1, 0, 1)]

    w1 = w1_ref[...]                 # (9*C1, Cin)
    w2 = w2_ref[...]                 # (9, C1)
    b1 = b1_ref[...]                 # (C1, 1)
    b2 = b2_ref[...]                 # (1, 1)
    mask = mask_ref[...]             # (1, P)

    for i in range(nb):
        x = x_ref[i]                 # (Cin, LE)

        # ---- conv1: one MXU push; taps folded via static lane-shifted adds ----
        t1 = jnp.dot(w1, x, preferred_element_type=jnp.float32)     # (9*C1, LE)
        h = t1[0:c1, margin + offs[0]:margin + offs[0] + P]
        for tap in range(1, 9):
            s = margin + offs[tap]
            h = h + t1[tap * c1:(tap + 1) * c1, s:s + P]
        # bias + ReLU, then zero the pad ring so conv2 sees proper zero padding.
        h = mask * jnp.maximum(h + b1, 0.0)                          # (C1, P)

        # ---- conv2 (C2 == 1): one MXU push + 9 lane-shifted row adds ----------
        t2 = jnp.dot(w2, h.astype(w2.dtype),
                     preferred_element_type=jnp.float32)             # (9, P)
        o = t2[0:1, margin + offs[0]:margin + offs[0] + lout]
        for tap in range(1, 9):
            s = margin + offs[tap]
            o = o + t2[tap:tap + 1, s:s + lout]
        o_ref[i] = jax.nn.sigmoid(o + b2).astype(o_ref.dtype)        # (1, LOUT)


def simple_edge_extractor(x_nchw, w1_hwio, b1, w2_hwio, b2, *, nb=1,
                          compute_dtype=jnp.bfloat16):
    """x_nchw: (N, Cin, H, W) float32 -> (N, 1, H, W) float32 (matches PyTorch)."""
    N, Cin, H, W = x_nchw.shape
    C1 = w1_hwio.shape[-1]
    assert w1_hwio.shape == (3, 3, Cin, C1)
    assert w2_hwio.shape == (3, 3, C1, 1)
    assert N % nb == 0

    Hp, Wp = H + 2, W + 2
    P = Hp * Wp
    margin = Wp + 1
    lout = (H - 1) * Wp + W
    LE = ((P + 2 * margin + 127) // 128) * 128   # lane-aligned padded length

    # TODO(synk): for much larger H*W (or C1) strip-tile the flattened spatial
    # axis with an extra grid dim so slabs stay within v7x's 64 MiB VMEM;
    # unnecessary at these sizes.

    # Channel-major, spatially padded, row-major flattened (pad columns in-line),
    # plus `margin` zero lanes each side so every conv tap is a static lane slice.
    xpad = jnp.pad(x_nchw.astype(jnp.float32), ((0, 0), (0, 0), (1, 1), (1, 1)))
    xflat = xpad.reshape(N, Cin, P)
    xflat = jnp.pad(xflat, ((0, 0), (0, 0), (margin, LE - P - margin)))
    xflat = xflat.astype(compute_dtype)

    w1big = (w1_hwio.astype(jnp.float32).reshape(9, Cin, C1)
             .transpose(0, 2, 1).reshape(9 * C1, Cin)).astype(compute_dtype)
    w2mat = w2_hwio.astype(jnp.float32).reshape(9, C1).astype(compute_dtype)
    b1col = b1.reshape(C1, 1).astype(jnp.float32)
    b2mat = b2.reshape(1, 1).astype(jnp.float32)

    # interior mask (1.0 where the padded-flat position is a real pixel)
    f = np.arange(P)
    yy, xx = f // Wp, f % Wp
    interior = (yy >= 1) & (yy <= H) & (xx >= 1) & (xx <= W)
    mask = jnp.asarray(interior.astype(np.float32).reshape(1, P))

    kernel = functools.partial(edge_kernel, H=H, W=W, nb=nb)

    out_rows = pl.pallas_call(
        kernel,
        out_shape=jax.ShapeDtypeStruct((N, 1, lout), jnp.float32),
        grid=(N // nb,),
        in_specs=[
            pl.BlockSpec((nb, Cin, LE), lambda n: (n, 0, 0)),
            pl.BlockSpec((9 * C1, Cin), lambda n: (0, 0)),
            pl.BlockSpec((C1, 1), lambda n: (0, 0)),
            pl.BlockSpec((9, C1), lambda n: (0, 0)),
            pl.BlockSpec((1, 1), lambda n: (0, 0)),
            pl.BlockSpec((1, P), lambda n: (0, 0)),
        ],
        out_specs=pl.BlockSpec((nb, 1, lout), lambda n: (n, 0, 0)),
        compiler_params=pltpu.CompilerParams(
            dimension_semantics=("parallel",)),
    )(xflat, w1big, b1col, w2mat, b2mat, mask)

    # Strip the in-line pad columns: valid pixel (oy, ox) sits at lane oy*Wp + ox.
    out = jnp.pad(out_rows.reshape(N, lout), ((0, 0), (0, H * Wp - lout)))
    out = out.reshape(N, H, Wp)[:, :, :W]
    return out.reshape(N, 1, H, W)


def _reference(x_nchw, w1_hwio, b1, w2_hwio, b2):
    """Plain-JAX reference (same semantics as the PyTorch module)."""
    x = jnp.transpose(x_nchw, (0, 2, 3, 1))
    dn = ("NHWC", "HWIO", "NHWC")
    h = jax.lax.conv_general_dilated(x, w1_hwio, (1, 1), "SAME",
                                     dimension_numbers=dn) + b1
    h = jnp.maximum(h, 0.0)
    o = jax.lax.conv_general_dilated(h, w2_hwio, (1, 1), "SAME",
                                     dimension_numbers=dn) + b2
    o = jax.nn.sigmoid(o)
    return jnp.transpose(o, (0, 3, 1, 2))


if __name__ == "__main__":
    # Small deterministic setup: batch=2, in_ch=3, spatial=16x16.
    key = jax.random.PRNGKey(0)
    kx, kw1, kb1, kw2, kb2 = jax.random.split(key, 5)

    N, Cin, H, W = 2, 3, 16, 16
    C1, C2 = 16, 1

    x = jax.random.normal(kx, (N, Cin, H, W), dtype=jnp.float32)

    # Deterministic synthetic parameters (PyTorch-like uniform init scale).
    bound1 = 1.0 / np.sqrt(Cin * 9)
    bound2 = 1.0 / np.sqrt(C1 * 9)
    w1 = jax.random.uniform(kw1, (3, 3, Cin, C1), jnp.float32, -bound1, bound1)
    b1 = jax.random.uniform(kb1, (C1,), jnp.float32, -bound1, bound1)
    w2 = jax.random.uniform(kw2, (3, 3, C1, C2), jnp.float32, -bound2, bound2)
    b2 = jax.random.uniform(kb2, (C2,), jnp.float32, -bound2, bound2)

    ref = jax.block_until_ready(_reference(x, w1, b1, w2, b2))

    # f32 MXU path, one image per ("parallel") grid step -> exact check.
    out_f32 = jax.block_until_ready(
        simple_edge_extractor(x, w1, b1, w2, b2, nb=1, compute_dtype=jnp.float32))
    assert out_f32.shape == (N, 1, H, W), out_f32.shape
    np.testing.assert_allclose(np.asarray(out_f32), np.asarray(ref),
                               rtol=1e-4, atol=1e-5)

    # bf16 MXU operands (f32 accumulation), whole batch per grid step.
    out_bf16 = jax.block_until_ready(
        simple_edge_extractor(x, w1, b1, w2, b2, nb=N, compute_dtype=jnp.bfloat16))
    assert out_bf16.shape == (N, 1, H, W), out_bf16.shape
    np.testing.assert_allclose(np.asarray(out_bf16), np.asarray(ref),
                               rtol=2e-2, atol=2e-2)

    print("KERNEL_OK")
</pallas_src>

<mosaic_0001>
module attributes {stable_mosaic.version = 11 : i64} {
  func.func @edge_kernel(%arg0: i32, %arg1: memref<1x3x384xf32, #tpu.memory_space<vmem>>, %arg2: memref<144x3xf32, #tpu.memory_space<vmem>>, %arg3: memref<16x1xf32, #tpu.memory_space<vmem>>, %arg4: memref<9x16xf32, #tpu.memory_space<vmem>>, %arg5: memref<1x1xf32, #tpu.memory_space<vmem>>, %arg6: memref<1x324xf32, #tpu.memory_space<vmem>>, %arg7: memref<1x1x286xf32, #tpu.memory_space<vmem>>) attributes {dimension_semantics = [#tpu.dimension_semantics<parallel>], iteration_bounds = array<i64: 2>, scalar_prefetch = 0 : i64, scratch_operands = 0 : i64, tpu.core_type = #tpu.core_type<tc>, window_params = [{transform_indices = @transform_0, window_bounds = array<i64: 1, 3, 384>}, {pipeline_mode = #tpu.pipeline_mode<synchronous>, transform_indices = @transform_1, window_bounds = array<i64: 144, 3>}, {pipeline_mode = #tpu.pipeline_mode<synchronous>, transform_indices = @transform_2, window_bounds = array<i64: 16, 1>}, {pipeline_mode = #tpu.pipeline_mode<synchronous>, transform_indices = @transform_3, window_bounds = array<i64: 9, 16>}, {pipeline_mode = #tpu.pipeline_mode<synchronous>, transform_indices = @transform_4, window_bounds = array<i64: 1, 1>}, {pipeline_mode = #tpu.pipeline_mode<synchronous>, transform_indices = @transform_5, window_bounds = array<i64: 1, 324>}, {transform_indices = @transform_6, window_bounds = array<i64: 1, 1, 286>}]} {
    %c0 = arith.constant 0 : index
    %c0_0 = arith.constant 0 : index
    %0 = vector.load %arg2[%c0, %c0_0] : memref<144x3xf32, #tpu.memory_space<vmem>>, vector<144x3xf32>
    %c0_1 = arith.constant 0 : index
    %c0_2 = arith.constant 0 : index
    %1 = vector.load %arg4[%c0_1, %c0_2] : memref<9x16xf32, #tpu.memory_space<vmem>>, vector<9x16xf32>
    %c0_3 = arith.constant 0 : index
    %c0_4 = arith.constant 0 : index
    %2 = vector.load %arg3[%c0_3, %c0_4] : memref<16x1xf32, #tpu.memory_space<vmem>>, vector<16x1xf32>
    %c0_5 = arith.constant 0 : index
    %c0_6 = arith.constant 0 : index
    %3 = vector.load %arg5[%c0_5, %c0_6] : memref<1x1xf32, #tpu.memory_space<vmem>>, vector<1x1xf32>
    %c0_7 = arith.constant 0 : index
    %c0_8 = arith.constant 0 : index
    %4 = vector.load %arg6[%c0_7, %c0_8] : memref<1x324xf32, #tpu.memory_space<vmem>>, vector<1x324xf32>
    %c0_9 = arith.constant 0 : index
    %c0_10 = arith.constant 0 : index
    %c0_11 = arith.constant 0 : index
    %5 = vector.load %arg1[%c0_9, %c0_10, %c0_11] : memref<1x3x384xf32, #tpu.memory_space<vmem>>, vector<1x3x384xf32>
    %6 = vector.shape_cast %5 : vector<1x3x384xf32> to vector<3x384xf32>
    %cst = arith.constant dense<0.000000e+00> : vector<144x384xf32>
    %7 = tpu.matmul %0, %6, %cst {dimension_numbers = #tpu.dot_dimension_numbers<[1], [0], [0], [1], [0, 0, 1, 1], [], []>} : vector<144x3xf32>, vector<3x384xf32>, vector<144x384xf32> -> vector<144x384xf32>
    %8 = vector.extract_strided_slice %7 {offsets = [0, 0], sizes = [16, 324], strides = [1, 1]} : vector<144x384xf32> to vector<16x324xf32>
    %9 = vector.extract_strided_slice %7 {offsets = [16, 1], sizes = [16, 324], strides = [1, 1]} : vector<144x384xf32> to vector<16x324xf32>
    %10 = arith.addf %8, %9 : vector<16x324xf32>
    %11 = vector.extract_strided_slice %7 {offsets = [32, 2], sizes = [16, 324], strides = [1, 1]} : vector<144x384xf32> to vector<16x324xf32>
    %12 = arith.addf %10, %11 : vector<16x324xf32>
    %13 = vector.extract_strided_slice %7 {offsets = [48, 18], sizes = [16, 324], strides = [1, 1]} : vector<144x384xf32> to vector<16x324xf32>
    %14 = arith.addf %12, %13 : vector<16x324xf32>
    %15 = vector.extract_strided_slice %7 {offsets = [64, 19], sizes = [16, 324], strides = [1, 1]} : vector<144x384xf32> to vector<16x324xf32>
    %16 = arith.addf %14, %15 : vector<16x324xf32>
    %17 = vector.extract_strided_slice %7 {offsets = [80, 20], sizes = [16, 324], strides = [1, 1]} : vector<144x384xf32> to vector<16x324xf32>
    %18 = arith.addf %16, %17 : vector<16x324xf32>
    %19 = vector.extract_strided_slice %7 {offsets = [96, 36], sizes = [16, 324], strides = [1, 1]} : vector<144x384xf32> to vector<16x324xf32>
    %20 = arith.addf %18, %19 : vector<16x324xf32>
    %21 = vector.extract_strided_slice %7 {offsets = [112, 37], sizes = [16, 324], strides = [1, 1]} : vector<144x384xf32> to vector<16x324xf32>
    %22 = arith.addf %20, %21 : vector<16x324xf32>
    %23 = vector.extract_strided_slice %7 {offsets = [128, 38], sizes = [16, 324], strides = [1, 1]} : vector<144x384xf32> to vector<16x324xf32>
    %24 = arith.addf %22, %23 : vector<16x324xf32>
    %25 = vector.broadcast %2 : vector<16x1xf32> to vector<16x324xf32>
    %26 = arith.addf %24, %25 : vector<16x324xf32>
    %cst_12 = arith.constant 0.000000e+00 : f32
    %27 = vector.broadcast %cst_12 : f32 to vector<16x324xf32>
    %28 = arith.maximumf %26, %27 : vector<16x324xf32>
    %29 = vector.broadcast %4 : vector<1x324xf32> to vector<16x324xf32>
    %30 = arith.mulf %29, %28 : vector<16x324xf32>
    %cst_13 = arith.constant dense<0.000000e+00> : vector<9x324xf32>
    %31 = tpu.matmul %1, %30, %cst_13 {dimension_numbers = #tpu.dot_dimension_numbers<[1], [0], [0], [1], [0, 0, 1, 1], [], []>} : vector<9x16xf32>, vector<16x324xf32>, vector<9x324xf32> -> vector<9x324xf32>
    %32 = vector.extract_strided_slice %31 {offsets = [0, 0], sizes = [1, 286], strides = [1, 1]} : vector<9x324xf32> to vector<1x286xf32>
    %33 = vector.extract_strided_slice %31 {offsets = [1, 1], sizes = [1, 286], strides = [1, 1]} : vector<9x324xf32> to vector<1x286xf32>
    %34 = arith.addf %32, %33 : vector<1x286xf32>
    %35 = vector.extract_strided_slice %31 {offsets = [2, 2], sizes = [1, 286], strides = [1, 1]} : vector<9x324xf32> to vector<1x286xf32>
    %36 = arith.addf %34, %35 : vector<1x286xf32>
    %37 = vector.extract_strided_slice %31 {offsets = [3, 18], sizes = [1, 286], strides = [1, 1]} : vector<9x324xf32> to vector<1x286xf32>
    %38 = arith.addf %36, %37 : vector<1x286xf32>
    %39 = vector.extract_strided_slice %31 {offsets = [4, 19], sizes = [1, 286], strides = [1, 1]} : vector<9x324xf32> to vector<1x286xf32>
    %40 = arith.addf %38, %39 : vector<1x286xf32>
    %41 = vector.extract_strided_slice %31 {offsets = [5, 20], sizes = [1, 286], strides = [1, 1]} : vector<9x324xf32> to vector<1x286xf32>
    %42 = arith.addf %40, %41 : vector<1x286xf32>
    %43 = vector.extract_strided_slice %31 {offsets = [6, 36], sizes = [1, 286], strides = [1, 1]} : vector<9x324xf32> to vector<1x286xf32>
    %44 = arith.addf %42, %43 : vector<1x286xf32>
    %45 = vector.extract_strided_slice %31 {offsets = [7, 37], sizes = [1, 286], strides = [1, 1]} : vector<9x324xf32> to vector<1x286xf32>
    %46 = arith.addf %44, %45 : vector<1x286xf32>
    %47 = vector.extract_strided_slice %31 {offsets = [8, 38], sizes = [1, 286], strides = [1, 1]} : vector<9x324xf32> to vector<1x286xf32>
    %48 = arith.addf %46, %47 : vector<1x286xf32>
    %49 = vector.broadcast %3 : vector<1x1xf32> to vector<1x286xf32>
    %50 = arith.addf %48, %49 : vector<1x286xf32>
    %51 = arith.negf %50 : vector<1x286xf32>
    %52 = math.exp %51 : vector<1x286xf32>
    %cst_14 = arith.constant 1.000000e+00 : f32
    %53 = vector.broadcast %cst_14 : f32 to vector<1x286xf32>
    %54 = arith.addf %53, %52 : vector<1x286xf32>
    %55 = arith.divf %53, %54 : vector<1x286xf32>
    %c0_15 = arith.constant 0 : index
    %c0_16 = arith.constant 0 : index
    %c0_17 = arith.constant 0 : index
    %56 = vector.load %arg7[%c0_15, %c0_16, %c0_17] : memref<1x1x286xf32, #tpu.memory_space<vmem>>, vector<1x1x286xf32>
    %57 = vector.shape_cast %56 : vector<1x1x286xf32> to vector<1x286xf32>
    %58 = vector.shape_cast %55 : vector<1x286xf32> to vector<1x1x286xf32>
    tpu.vector_store %arg7[%c0_15, %c0_16, %c0_17], %58 {strides = array<i32>} : memref<1x1x286xf32, #tpu.memory_space<vmem>>, vector<1x1x286xf32>,
    return
  }
  func.func @transform_0(%arg0: i32) -> (i32, i32, i32) {
    %c0_i32 = arith.constant 0 : i32
    %c0_i32_0 = arith.constant 0 : i32
    %c0_i32_1 = arith.constant 0 : i32
    return %arg0, %c0_i32, %c0_i32_0 : i32, i32, i32
  }
  func.func @transform_1(%arg0: i32) -> (i32, i32) {
    %c0_i32 = arith.constant 0 : i32
    %c0_i32_0 = arith.constant 0 : i32
    %c0_i32_1 = arith.constant 0 : i32
    return %c0_i32, %c0_i32_0 : i32, i32
  }
  func.func @transform_2(%arg0: i32) -> (i32, i32) {
    %c0_i32 = arith.constant 0 : i32
    %c0_i32_0 = arith.constant 0 : i32
    %c0_i32_1 = arith.constant 0 : i32
    return %c0_i32, %c0_i32_0 : i32, i32
  }
  func.func @transform_3(%arg0: i32) -> (i32, i32) {
    %c0_i32 = arith.constant 0 : i32
    %c0_i32_0 = arith.constant 0 : i32
    %c0_i32_1 = arith.constant 0 : i32
    return %c0_i32, %c0_i32_0 : i32, i32
  }
  func.func @transform_4(%arg0: i32) -> (i32, i32) {
    %c0_i32 = arith.constant 0 : i32
    %c0_i32_0 = arith.constant 0 : i32
    %c0_i32_1 = arith.constant 0 : i32
    return %c0_i32, %c0_i32_0 : i32, i32
  }
  func.func @transform_5(%arg0: i32) -> (i32, i32) {
    %c0_i32 = arith.constant 0 : i32
    %c0_i32_0 = arith.constant 0 : i32
    %c0_i32_1 = arith.constant 0 : i32
    return %c0_i32, %c0_i32_0 : i32, i32
  }
  func.func @transform_6(%arg0: i32) -> (i32, i32, i32) {
    %c0_i32 = arith.constant 0 : i32
    %c0_i32_0 = arith.constant 0 : i32
    %c0_i32_1 = arith.constant 0 : i32
    return %arg0, %c0_i32, %c0_i32_0 : i32, i32, i32
  }
}

</mosaic_0001>

<llo_original>
// kernel: tpu_custom_call.1
$region0: #{tpu_custom_call.1}
  #allocation0 [shape = 'u32[]', space=smem, size = 0x4, offset = 0x4, fixed_abs, tag = 'smem constant byte address 0x4 - core index']
  #allocation1 [shape = 'u32[72,128]{1,0:T(1,128)}', space=vmem, size = 0x9000, scoped, tag = 'internal scratch']
  #allocation2 [shape = 'f32[1,1]{1,0:T(1,128)S(1)}', space=vmem, size = 0x200, scoped, tag = 'scoped memory for tpu_custom_call.1']
  %s0 = inlined_call_operand.vmem [shape: f32[2,3,384], index: 0, kind: input, shape index: {}]
  %s1 = inlined_call_operand.vmem [shape: f32[144,3], index: 1, kind: input, shape index: {}]
  %s2 = inlined_call_operand.vmem [shape: f32[16,1], index: 2, kind: input, shape index: {}]
  %s3 = inlined_call_operand.vmem [shape: f32[9,16], index: 3, kind: input, shape index: {}]
  %s4 = inlined_call_operand.<no memory space> [shape: f32[1,1], index: 4, kind: input, shape index: {}]
  %s5 = inlined_call_operand.vmem [shape: f32[1,324], index: 5, kind: input, shape index: {}]
  %s6 = inlined_call_operand.hbm [shape: f32[2,1,286], index: 6, kind: output, shape index: {}]
  %s7 = sld [smem:[#allocation0]]
  $region57: #{tpu_custom_call.1} parent=0
    _
  %s9 = ssub.s32 1, %s7
  %s10 = scalar_select 0, %s9, %s7
  %v11 = vstv %s4
  %12 = vst [vmem:[#allocation2] sm:$0x1] %v11
  $region1: #{tpu_custom_call.1} parent=0
    #allocation3 [shape = 'u8[3072]{0}', space=vmem, size = 0xc00, scoped, tag = 'output window, operand 0']
    #allocation4 [shape = 's32[2]{0}', space=sflag, size = 0x8, scoped, tag = 'scoped memory for tpu_custom_call.1']
    %13 = vsyncpa [#allocation4], 0
    %s14 = scalar_lea.sflag [#allocation4], 1
    %15 = vsyncpa %s14, 0
    loop: start=0, step=1, limit=4
    $region2: #{tpu_custom_call.1} parent=1 // loop_pre_header
      _
    $region3: #{tpu_custom_call.1} parent=1 // loop_header
      %s17 = sphi 0, %s21
      %p18 = scmp.ge.s32.totalorder %s17, 4
      %s27 = sphi 0, %s29
      %s30 = sphi 0, %s27
      %s31 = sphi 0, %s30
      %s47 = sphi 0, %s31
      %s51 = sphi 0, %s51
      %s53 = sphi 0, %s51
      %s54 = sphi 0, %s53
      %s68 = sphi 0, %s54
      %s72 = sphi 0, %s72
      %s74 = sphi 0, %s72
      %s75 = sphi 0, %s74
      %s89 = sphi 0, %s75
      %s93 = sphi 0, %s93
      %s95 = sphi 0, %s93
      %s96 = sphi 0, %s95
      %s110 = sphi 0, %s96
      %s114 = sphi 0, %s114
      %s116 = sphi 0, %s114
      %s117 = sphi 0, %s116
      %s131 = sphi 0, %s117
      %s135 = sphi 0, %s135
      %s137 = sphi 0, %s135
      %s138 = sphi 0, %s137
      %s152 = sphi 0, %s138
      %s158 = sphi 0, %s160
      %s161 = sphi 0, %s158
      %s162 = sphi 0, %s161
      %s178 = sphi 0, %s162
    $region4: #{tpu_custom_call.1} parent=1 // loop_header_branch
      %20 = sbr.rel (%p18) target = $region8
    $region5: #{tpu_custom_call.1} parent=1 // loop_body
      %s22 = ssub.s32 %s17, 1
      %s23 = ssub.s32 %s17, 2
      %s24 = sadd.s32 %s17, 1
      %s25 = ssub.s32 %s17, %s24
      %p26 = scmp.eq.s32.totalorder %s25, 0
      %s28 = sadd.s32 %s27, 1
      %s29 = scalar_select %p26, %s27, %s28
      %p32 = pneg %p26
      %p33 = scmp.eq.s32.totalorder %s17, 1
      %p34 = por %p32, %p33
      %p35 = scmp.ne.s32.totalorder %s27, %s30
      %p36 = scmp.eq.s32.totalorder %s17, 0
      %p37 = por %p35, %p36
      %p38 = scmp.ne.s32.totalorder %s27, %s30
      %p39 = scmp.eq.s32.totalorder %s22, 1
      %p40 = por %p38, %p39
      %p41 = scmp.ne.s32.totalorder %s30, %s31
      %p42 = scmp.eq.s32.totalorder %s22, 0
      %p43 = por %p41, %p42
      %p44 = scmp.ne.s32.totalorder %s30, %s31
      %p45 = scmp.eq.s32.totalorder %s23, 1
      %p46 = por %p44, %p45
      %p48 = scmp.ne.s32.totalorder %s31, %s47
      %p49 = scmp.eq.s32.totalorder %s23, 0
      %p50 = por %p48, %p49
      %s52 = sadd.s32 %s51, 1
      %p55 = scmp.eq.s32.totalorder %s17, 1
      %p56 = scmp.ne.s32.totalorder %s51, %s53
      %p57 = scmp.eq.s32.totalorder %s17, 0
      %p58 = por %p56, %p57
      %p59 = scmp.ne.s32.totalorder %s51, %s53
      %p60 = scmp.eq.s32.totalorder %s22, 1
      %p61 = por %p59, %p60
      %p62 = scmp.ne.s32.totalorder %s53, %s54
      %p63 = scmp.eq.s32.totalorder %s22, 0
      %p64 = por %p62, %p63
      %p65 = scmp.ne.s32.totalorder %s53, %s54
      %p66 = scmp.eq.s32.totalorder %s23, 1
      %p67 = por %p65, %p66
      %p69 = scmp.ne.s32.totalorder %s54, %s68
      %p70 = scmp.eq.s32.totalorder %s23, 0
      %p71 = por %p69, %p70
      %s73 = sadd.s32 %s72, 1
      %p76 = scmp.eq.s32.totalorder %s17, 1
      %p77 = scmp.ne.s32.totalorder %s72, %s74
      %p78 = scmp.eq.s32.totalorder %s17, 0
      %p79 = por %p77, %p78
      %p80 = scmp.ne.s32.totalorder %s72, %s74
      %p81 = scmp.eq.s32.totalorder %s22, 1
      %p82 = por %p80, %p81
      %p83 = scmp.ne.s32.totalorder %s74, %s75
      %p84 = scmp.eq.s32.totalorder %s22, 0
      %p85 = por %p83, %p84
      %p86 = scmp.ne.s32.totalorder %s74, %s75
      %p87 = scmp.eq.s32.totalorder %s23, 1
      %p88 = por %p86, %p87
      %p90 = scmp.ne.s32.totalorder %s75, %s89
      %p91 = scmp.eq.s32.totalorder %s23, 0
      %p92 = por %p90, %p91
      %s94 = sadd.s32 %s93, 1
      %p97 = scmp.eq.s32.totalorder %s17, 1
      %p98 = scmp.ne.s32.totalorder %s93, %s95
      %p99 = scmp.eq.s32.totalorder %s17, 0
      %p100 = por %p98, %p99
      %p101 = scmp.ne.s32.totalorder %s93, %s95
      %p102 = scmp.eq.s32.totalorder %s22, 1
      %p103 = por %p101, %p102
      %p104 = scmp.ne.s32.totalorder %s95, %s96
      %p105 = scmp.eq.s32.totalorder %s22, 0
      %p106 = por %p104, %p105
      %p107 = scmp.ne.s32.totalorder %s95, %s96
      %p108 = scmp.eq.s32.totalorder %s23, 1
      %p109 = por %p107, %p108
      %p111 = scmp.ne.s32.totalorder %s96, %s110
      %p112 = scmp.eq.s32.totalorder %s23, 0
      %p113 = por %p111, %p112
      %s115 = sadd.s32 %s114, 1
      %p118 = scmp.eq.s32.totalorder %s17, 1
      %p119 = scmp.ne.s32.totalorder %s114, %s116
      %p120 = scmp.eq.s32.totalorder %s17, 0
      %p121 = por %p119, %p120
      %p122 = scmp.ne.s32.totalorder %s114, %s116
      %p123 = scmp.eq.s32.totalorder %s22, 1
      %p124 = por %p122, %p123
      %p125 = scmp.ne.s32.totalorder %s116, %s117
      %p126 = scmp.eq.s32.totalorder %s22, 0
      %p127 = por %p125, %p126
      %p128 = scmp.ne.s32.totalorder %s116, %s117
      %p129 = scmp.eq.s32.totalorder %s23, 1
      %p130 = por %p128, %p129
      %p132 = scmp.ne.s32.totalorder %s117, %s131
      %p133 = scmp.eq.s32.totalorder %s23, 0
      %p134 = por %p132, %p133
      %s136 = sadd.s32 %s135, 1
      %p139 = scmp.eq.s32.totalorder %s17, 1
      %p140 = scmp.ne.s32.totalorder %s135, %s137
      %p141 = scmp.eq.s32.totalorder %s17, 0
      %p142 = por %p140, %p141
      %p143 = scmp.ne.s32.totalorder %s135, %s137
      %p144 = scmp.eq.s32.totalorder %s22, 1
      %p145 = por %p143, %p144
      %p146 = scmp.ne.s32.totalorder %s137, %s138
      %p147 = scmp.eq.s32.totalorder %s22, 0
      %p148 = por %p146, %p147
      %p149 = scmp.ne.s32.totalorder %s137, %s138
      %p150 = scmp.eq.s32.totalorder %s23, 1
      %p151 = por %p149, %p150
      %p153 = scmp.ne.s32.totalorder %s138, %s152
      %p154 = scmp.eq.s32.totalorder %s23, 0
      %p155 = por %p153, %p154
      %s156 = ssub.s32 %s17, %s24
      %p157 = scmp.eq.s32.totalorder %s156, 0
      %s159 = sadd.s32 %s158, 1
      %s160 = scalar_select %p157, %s158, %s159
      %p163 = pneg %p157
      %p164 = scmp.eq.s32.totalorder %s17, 1
      %p165 = por %p163, %p164
      %p166 = scmp.ne.s32.totalorder %s158, %s161
      %p167 = scmp.eq.s32.totalorder %s17, 0
      %p168 = por %p166, %p167
      %p169 = scmp.ne.s32.totalorder %s158, %s161
      %p170 = scmp.eq.s32.totalorder %s22, 1
      %p171 = por %p169, %p170
      %p172 = scmp.ne.s32.totalorder %s161, %s162
      %p173 = scmp.eq.s32.totalorder %s22, 0
      %p174 = por %p172, %p173
      %p175 = scmp.ne.s32.totalorder %s161, %s162
      %p176 = scmp.eq.s32.totalorder %s23, 1
      %p177 = por %p175, %p176
      %p179 = scmp.ne.s32.totalorder %s162, %s178
      %p180 = scmp.eq.s32.totalorder %s23, 0
      %p181 = por %p179, %p180
      %p182 = scmp.le.s32.totalorder 1, %s17
      %p183 = scmp.lt.s32.totalorder %s17, 3
      %p184 = pnand %p182, %p183
      %p185 = pneg %p184
      // Predicated region
      $region9: #{tpu_custom_call.1} parent=5 // pred_check
        _
      $region10: #{tpu_custom_call.1} parent=5 // pred_check_branch
        %187 = sbr.rel (%p184) target = $region12
      $region11: #{tpu_custom_call.1} parent=5 // pred_region
        %s188 = ssub.s32 %s17, 1
        // Predicated region
        $region13: #{tpu_custom_call.1} parent=11 // pred_check
          %p189 = pneg %p64
        $region14: #{tpu_custom_call.1} parent=11 // pred_check_branch
          %191 = sbr.rel (%p189) target = $region16
        $region15: #{tpu_custom_call.1} parent=11 // pred_region
          _
        $region16: #{tpu_custom_call.1} parent=11 // pred_fallthru
          _
        // Predicated region
        $region17: #{tpu_custom_call.1} parent=11 // pred_check
          %p192 = pneg %p85
        $region18: #{tpu_custom_call.1} parent=11 // pred_check_branch
          %194 = sbr.rel (%p192) target = $region20
        $region19: #{tpu_custom_call.1} parent=11 // pred_region
          _
        $region20: #{tpu_custom_call.1} parent=11 // pred_fallthru
          _
        // Predicated region
        $region21: #{tpu_custom_call.1} parent=11 // pred_check
          %p195 = pneg %p106
        $region22: #{tpu_custom_call.1} parent=11 // pred_check_branch
          %197 = sbr.rel (%p195) target = $region24
        $region23: #{tpu_custom_call.1} parent=11 // pred_region
          _
        $region24: #{tpu_custom_call.1} parent=11 // pred_fallthru
          _
        // Predicated region
        $region25: #{tpu_custom_call.1} parent=11 // pred_check
          %p198 = pneg %p127
        $region26: #{tpu_custom_call.1} parent=11 // pred_check_branch
          %200 = sbr.rel (%p198) target = $region28
        $region27: #{tpu_custom_call.1} parent=11 // pred_region
          _
        $region28: #{tpu_custom_call.1} parent=11 // pred_fallthru
          _
        // Predicated region
        $region29: #{tpu_custom_call.1} parent=11 // pred_check
          %p201 = pneg %p148
        $region30: #{tpu_custom_call.1} parent=11 // pred_check_branch
          %203 = sbr.rel (%p201) target = $region32
        $region31: #{tpu_custom_call.1} parent=11 // pred_region
          _
        $region32: #{tpu_custom_call.1} parent=11 // pred_fallthru
          _
      $region12: #{tpu_custom_call.1} parent=5 // pred_fallthru
        _
      %p204 = scmp.lt.s32.totalorder %s17, 2
      // Predicated region
      $region33: #{tpu_custom_call.1} parent=5 // pred_check
        %p205 = pneg %p204
      $region34: #{tpu_custom_call.1} parent=5 // pred_check_branch
        %207 = sbr.rel (%p205) target = $region36
      $region35: #{tpu_custom_call.1} parent=5 // pred_region
        // Predicated region
        $region37: #{tpu_custom_call.1} parent=35 // pred_check
          %p208 = pneg %p37
        $region38: #{tpu_custom_call.1} parent=35 // pred_check_branch
          %210 = sbr.rel (%p208) target = $region40
        $region39: #{tpu_custom_call.1} parent=35 // pred_region
          %p211 = scmp.lt.s32.totalorder %s17, 1
          %s212 = scalar_select %p211, %s17, 1
          %s213 = smul.addr %s212, 3
          %s214 = smul.addr %s213, 4
          %s215 = scalar_lea.vmem %s0, %s214
        $region40: #{tpu_custom_call.1} parent=35 // pred_fallthru
          _
      $region36: #{tpu_custom_call.1} parent=5 // pred_fallthru
        _
      %p216 = scmp.le.s32.totalorder 1, %s17
      %p217 = scmp.lt.s32.totalorder %s17, 3
      %p218 = pnand %p216, %p217
      %p219 = pneg %p218
      // Predicated region
      $region41: #{tpu_custom_call.1} parent=5 // pred_check
        _
      $region42: #{tpu_custom_call.1} parent=5 // pred_check_branch
        %221 = sbr.rel (%p218) target = $region44
      $region43: #{tpu_custom_call.1} parent=5 // pred_region
        %s222 = ssub.s32 %s17, 1
        %p223 = scmp.lt.s32.totalorder %s22, 1
        %s224 = scalar_select %p223, %s22, 1
        %s225 = smul.addr %s224, 3
        %s226 = smul.addr %s225, 4
        %s227 = scalar_lea.vmem %s0, %s226
        %p228 = pneg %p43
        %p229 = pneg %p40
        %p230 = pneg %p64
        %p231 = pneg %p61
        %p232 = pneg %p85
        %p233 = pneg %p82
        %p234 = pneg %p106
        %p235 = pneg %p103
        %p236 = pneg %p127
        %p237 = pneg %p124
        %p238 = pneg %p148
        %p239 = pneg %p145
        %p240 = pneg %p174
        %p241 = pneg %p171
        %s242 = sand.u32 %s161, 1
        %s243 = scalar_lea.sflag [#allocation4], %s242
        %s244 = sand.u32 %s161, 1
        %s245 = smul.addr %s244, 3
        %s246 = scalar_lea.vmem [#allocation3], %s245
        %p247 = scmp.lt.s32.totalorder %s22, 1
        %s248 = scalar_select %p247, %s22, 1
        %s249 = smul.addr %s248, 3
        %s250 = smul.addr %s249, 4
        %s251 = scalar_lea.vmem %s0, %s250
        %v252 = vld [vmem:[%s1] sm:$0xff]
        %v253 = vld [vmem:[%s1 + $0x8] sm:$0xff]
        %v254 = vld [vmem:[%s1 + $0x10] sm:$0xff]
        %v255 = vld [vmem:[%s1 + $0x18] sm:$0xff]
        %v256 = vld [vmem:[%s1 + $0x20] sm:$0xff]
        %v257 = vld [vmem:[%s1 + $0x28] sm:$0xff]
        %v258 = vld [vmem:[%s1 + $0x30] sm:$0xff]
        %v259 = vld [vmem:[%s1 + $0x38] sm:$0xff]
        %v260 = vld [vmem:[%s1 + $0x40] sm:$0xff]
        %v261 = vld [vmem:[%s1 + $0x48] sm:$0xff]
        %v262 = vld [vmem:[%s1 + $0x50] sm:$0xff]
        %v263 = vld [vmem:[%s1 + $0x58] sm:$0xff]
        %v264 = vld [vmem:[%s1 + $0x60] sm:$0xff]
        %v265 = vld [vmem:[%s1 + $0x68] sm:$0xff]
        %v266 = vld [vmem:[%s1 + $0x70] sm:$0xff]
        %v267 = vld [vmem:[%s1 + $0x78] sm:$0xff]
        %v268 = vld [vmem:[%s1 + $0x80] sm:$0xff]
        %v269 = vld [vmem:[%s1 + $0x88] sm:$0xff]
        %v270 = vld [vmem:[%s3] sm:$0xff]
        %v271 = vld [vmem:[%s3 + $0x8] sm:$0x1]
        %v272 = vld [vmem:[%s2] sm:$0xff]
        %v273 = vld [vmem:[%s2 + $0x8] sm:$0xff]
        %v274 = vld [vmem:[#allocation2] sm:$0x1]
        %v275 = vld [vmem:[%s5] sm:$0x7]
        %v276 = vld [vmem:[%s251] sm:$0x77]
        %v277 = vld [vmem:[%s251 + $0x8] sm:$0x7]
        %280 = vst [vmem:[#allocation1] ss:$2 sm:$0xff] %v276
        %s281 = scalar_lea.vmem [#allocation1], 16
        %282 = vst [vmem:[%s281] ss:$2 sm:$0xff] %v277
        %v283 = vld.sshfl [vmem:[#allocation1] sm:$0xff pattern:$0x75316420]
        %v284 = vld.sshfl [vmem:[#allocation1 + $0x8] sm:$0xff pattern:$0x75316420]
        %v285 = vld.sshfl [vmem:[#allocation1 + $0x10] sm:$0xff pattern:$0x75316420]
        %vm286 = vcmask 23552
        %v288 = vsel %vm286, %v252, 0
        %v291 = vsel %vm286, %v253, 0
        %v294 = vsel %vm286, %v254, 0
        %v297 = vsel %vm286, %v255, 0
        %v300 = vsel %vm286, %v256, 0
        %v303 = vsel %vm286, %v257, 0
        %v306 = vsel %vm286, %v258, 0
        %v309 = vsel %vm286, %v259, 0
        %v312 = vsel %vm286, %v260, 0
        %v315 = vsel %vm286, %v261, 0
        %v318 = vsel %vm286, %v262, 0
        %v321 = vsel %vm286, %v263, 0
        %v324 = vsel %vm286, %v264, 0
        %v327 = vsel %vm286, %v265, 0
        %v330 = vsel %vm286, %v266, 0
        %v333 = vsel %vm286, %v267, 0
        %v336 = vsel %vm286, %v268, 0
        %v339 = vsel %vm286, %v269, 0
        %vm341 = vcmask 1042432
        %v342 = vsel %vm341, %v283, 0
        %v344 = vsel %vm341, %v284, 0
        %v346 = vsel %vm341, %v285, 0
        %348 = vmatpush.msra.mxu0 0.0
        %349 = vmatpush.msra.mxu0 0.0
        %350 = vmatpush.msra.mxu0 0.0
        %351 = vmatpush.msra.mxu0 0.0
        %352 = vmatpush.msra.mxu0 0.0
        %353 = vmatpush.msra.mxu0 0.0
        %354 = vmatpush.msra.mxu0 0.0
        %355 = vmatpush.msra.mxu0 0.0
        %356 = vmatpush.msra.mxu0 0.0
        %357 = vmatpush.msra.mxu0 0.0
        %358 = vmatpush.msra.mxu0 0.0
        %359 = vmatpush.msra.mxu0 0.0
        %360 = vmatpush.msra.mxu0 0.0
        %361 = vmatpush.msra.mxu0 0.0
        %362 = vmatpush.msra.mxu0 0.0
        %363 = vmatpush.msra.mxu0 %v342
        %364 = vmatmul.f32.gmra.mxu0 %v288
        %v365 = vpop.f32.mrf.mxu0
        %v366 = vadd.f32 0.0, %v365
        %367 = vmatmul.f32.gmra.mxu0 %v291
        %v368 = vpop.f32.mrf.mxu0
        %v369 = vadd.f32 0.0, %v368
        %370 = vmatmul.f32.gmra.mxu0 %v294
        %v371 = vpop.f32.mrf.mxu0
        %v372 = vadd.f32 0.0, %v371
        %373 = vmatmul.f32.gmra.mxu0 %v297
        %v374 = vpop.f32.mrf.mxu0
        %v375 = vadd.f32 0.0, %v374
        %376 = vmatmul.f32.gmra.mxu0 %v300
        %v377 = vpop.f32.mrf.mxu0
        %v378 = vadd.f32 0.0, %v377
        %379 = vmatmul.f32.gmra.mxu0 %v303
        %v380 = vpop.f32.mrf.mxu0
        %v381 = vadd.f32 0.0, %v380
        %382 = vmatmul.f32.gmra.mxu0 %v306
        %v383 = vpop.f32.mrf.mxu0
        %v384 = vadd.f32 0.0, %v383
        %385 = vmatmul.f32.gmra.mxu0 %v309
        %v386 = vpop.f32.mrf.mxu0
        %v387 = vadd.f32 0.0, %v386
        %388 = vmatmul.f32.gmra.mxu0 %v312
        %v389 = vpop.f32.mrf.mxu0
        %v390 = vadd.f32 0.0, %v389
        %391 = vmatmul.f32.gmra.mxu0 %v315
        %v392 = vpop.f32.mrf.mxu0
        %v393 = vadd.f32 0.0, %v392
        %394 = vmatmul.f32.gmra.mxu0 %v318
        %v395 = vpop.f32.mrf.mxu0
        %v396 = vadd.f32 0.0, %v395
        %397 = vmatmul.f32.gmra.mxu0 %v321
        %v398 = vpop.f32.mrf.mxu0
        %v399 = vadd.f32 0.0, %v398
        %400 = vmatmul.f32.gmra.mxu0 %v324
        %v401 = vpop.f32.mrf.mxu0
        %v402 = vadd.f32 0.0, %v401
        %403 = vmatmul.f32.gmra.mxu0 %v327
        %v404 = vpop.f32.mrf.mxu0
        %v405 = vadd.f32 0.0, %v404
        %406 = vmatmul.f32.gmra.mxu0 %v330
        %v407 = vpop.f32.mrf.mxu0
        %v408 = vadd.f32 0.0, %v407
        %409 = vmatmul.f32.gmra.mxu0 %v333
        %v410 = vpop.f32.mrf.mxu0
        %v411 = vadd.f32 0.0, %v410
        %412 = vmatmul.f32.gmra.mxu0 %v336
        %v413 = vpop.f32.mrf.mxu0
        %v414 = vadd.f32 0.0, %v413
        %415 = vmatmul.f32.gmra.mxu0 %v339
        %v416 = vpop.f32.mrf.mxu0
        %v417 = vadd.f32 0.0, %v416
        %418 = vdwg.mxu0
        %419 = vmatpush.msra.mxu0 0.0
        %420 = vmatpush.msra.mxu0 0.0
        %421 = vmatpush.msra.mxu0 0.0
        %422 = vmatpush.msra.mxu0 0.0
        %423 = vmatpush.msra.mxu0 0.0
        %424 = vmatpush.msra.mxu0 0.0
        %425 = vmatpush.msra.mxu0 0.0
        %426 = vmatpush.msra.mxu0 0.0
        %427 = vmatpush.msra.mxu0 0.0
        %428 = vmatpush.msra.mxu0 0.0
        %429 = vmatpush.msra.mxu0 0.0
        %430 = vmatpush.msra.mxu0 0.0
        %431 = vmatpush.msra.mxu0 0.0
        %432 = vmatpush.msra.mxu0 0.0
        %433 = vmatpush.msra.mxu0 0.0
        %434 = vmatpush.msra.mxu0 %v344
        %435 = vmatmul.f32.gmra.mxu0 %v288
        %v436 = vpop.f32.mrf.mxu0
        %v437 = vadd.f32 0.0, %v436
        %438 = vmatmul.f32.gmra.mxu0 %v291
        %v439 = vpop.f32.mrf.mxu0
        %v440 = vadd.f32 0.0, %v439
        %441 = vmatmul.f32.gmra.mxu0 %v294
        %v442 = vpop.f32.mrf.mxu0
        %v443 = vadd.f32 0.0, %v442
        %444 = vmatmul.f32.gmra.mxu0 %v297
        %v445 = vpop.f32.mrf.mxu0
        %v446 = vadd.f32 0.0, %v445
        %447 = vmatmul.f32.gmra.mxu0 %v300
        %v448 = vpop.f32.mrf.mxu0
        %v449 = vadd.f32 0.0, %v448
        %450 = vmatmul.f32.gmra.mxu0 %v303
        %v451 = vpop.f32.mrf.mxu0
        %v452 = vadd.f32 0.0, %v451
        %453 = vmatmul.f32.gmra.mxu0 %v306
        %v454 = vpop.f32.mrf.mxu0
        %v455 = vadd.f32 0.0, %v454
        %456 = vmatmul.f32.gmra.mxu0 %v309
        %v457 = vpop.f32.mrf.mxu0
        %v458 = vadd.f32 0.0, %v457
        %459 = vmatmul.f32.gmra.mxu0 %v312
        %v460 = vpop.f32.mrf.mxu0
        %v461 = vadd.f32 0.0, %v460
        %462 = vmatmul.f32.gmra.mxu0 %v315
        %v463 = vpop.f32.mrf.mxu0
        %v464 = vadd.f32 0.0, %v463
        %465 = vmatmul.f32.gmra.mxu0 %v318
        %v466 = vpop.f32.mrf.mxu0
        %v467 = vadd.f32 0.0, %v466
        %468 = vmatmul.f32.gmra.mxu0 %v321
        %v469 = vpop.f32.mrf.mxu0
        %v470 = vadd.f32 0.0, %v469
        %471 = vmatmul.f32.gmra.mxu0 %v324
        %v472 = vpop.f32.mrf.mxu0
        %v473 = vadd.f32 0.0, %v472
        %474 = vmatmul.f32.gmra.mxu0 %v327
        %v475 = vpop.f32.mrf.mxu0
        %v476 = vadd.f32 0.0, %v475
        %477 = vmatmul.f32.gmra.mxu0 %v330
        %v478 = vpop.f32.mrf.mxu0
        %v479 = vadd.f32 0.0, %v478
        %480 = vmatmul.f32.gmra.mxu0 %v333
        %v481 = vpop.f32.mrf.mxu0
        %v482 = vadd.f32 0.0, %v481
        %483 = vmatmul.f32.gmra.mxu0 %v336
        %v484 = vpop.f32.mrf.mxu0
        %v485 = vadd.f32 0.0, %v484
        %486 = vmatmul.f32.gmra.mxu0 %v339
        %v487 = vpop.f32.mrf.mxu0
        %v488 = vadd.f32 0.0, %v487
        %489 = vdwg.mxu0
        %490 = vmatpush.msra.mxu0 0.0
        %491 = vmatpush.msra.mxu0 0.0
        %492 = vmatpush.msra.mxu0 0.0
        %493 = vmatpush.msra.mxu0 0.0
        %494 = vmatpush.msra.mxu0 0.0
        %495 = vmatpush.msra.mxu0 0.0
        %496 = vmatpush.msra.mxu0 0.0
        %497 = vmatpush.msra.mxu0 0.0
        %498 = vmatpush.msra.mxu0 0.0
        %499 = vmatpush.msra.mxu0 0.0
        %500 = vmatpush.msra.mxu0 0.0
        %501 = vmatpush.msra.mxu0 0.0
        %502 = vmatpush.msra.mxu0 0.0
        %503 = vmatpush.msra.mxu0 0.0
        %504 = vmatpush.msra.mxu0 0.0
        %505 = vmatpush.msra.mxu0 %v346
        %506 = vmatmul.f32.gmra.mxu0 %v288
        %v507 = vpop.f32.mrf.mxu0
        %v508 = vadd.f32 0.0, %v507
        %509 = vmatmul.f32.gmra.mxu0 %v291
        %v510 = vpop.f32.mrf.mxu0
        %v511 = vadd.f32 0.0, %v510
        %512 = vmatmul.f32.gmra.mxu0 %v294
        %v513 = vpop.f32.mrf.mxu0
        %v514 = vadd.f32 0.0, %v513
        %515 = vmatmul.f32.gmra.mxu0 %v297
        %v516 = vpop.f32.mrf.mxu0
        %v517 = vadd.f32 0.0, %v516
        %518 = vmatmul.f32.gmra.mxu0 %v300
        %v519 = vpop.f32.mrf.mxu0
        %v520 = vadd.f32 0.0, %v519
        %521 = vmatmul.f32.gmra.mxu0 %v303
        %v522 = vpop.f32.mrf.mxu0
        %v523 = vadd.f32 0.0, %v522
        %524 = vmatmul.f32.gmra.mxu0 %v306
        %v525 = vpop.f32.mrf.mxu0
        %v526 = vadd.f32 0.0, %v525
        %527 = vmatmul.f32.gmra.mxu0 %v309
        %v528 = vpop.f32.mrf.mxu0
        %v529 = vadd.f32 0.0, %v528
        %530 = vmatmul.f32.gmra.mxu0 %v312
        %v531 = vpop.f32.mrf.mxu0
        %v532 = vadd.f32 0.0, %v531
        %533 = vmatmul.f32.gmra.mxu0 %v315
        %v534 = vpop.f32.mrf.mxu0
        %v535 = vadd.f32 0.0, %v534
        %536 = vmatmul.f32.gmra.mxu0 %v318
        %v537 = vpop.f32.mrf.mxu0
        %v538 = vadd.f32 0.0, %v537
        %539 = vmatmul.f32.gmra.mxu0 %v321
        %v540 = vpop.f32.mrf.mxu0
        %v541 = vadd.f32 0.0, %v540
        %542 = vmatmul.f32.gmra.mxu0 %v324
        %v543 = vpop.f32.mrf.mxu0
        %v544 = vadd.f32 0.0, %v543
        %545 = vmatmul.f32.gmra.mxu0 %v327
        %v546 = vpop.f32.mrf.mxu0
        %v547 = vadd.f32 0.0, %v546
        %548 = vmatmul.f32.gmra.mxu0 %v330
        %v549 = vpop.f32.mrf.mxu0
        %v550 = vadd.f32 0.0, %v549
        %551 = vmatmul.f32.gmra.mxu0 %v333
        %v552 = vpop.f32.mrf.mxu0
        %v553 = vadd.f32 0.0, %v552
        %554 = vmatmul.f32.gmra.mxu0 %v336
        %v555 = vpop.f32.mrf.mxu0
        %v556 = vadd.f32 0.0, %v555
        %557 = vmatmul.f32.gmra.mxu0 %v339
        %v558 = vpop.f32.mrf.mxu0
        %v559 = vadd.f32 0.0, %v558
        %560 = vdwg.mxu0
        %567 = vrot.lane.b32.xlu0 %v372, 127
        %v568 = vpop.permute.xlu0 %567
        %569 = vrot.lane.b32.xlu0 %v443, 127
        %v570 = vpop.permute.xlu0 %569
        %571 = vrot.lane.b32.xlu0 %v514, 127
        %v572 = vpop.permute.xlu0 %571
        %573 = vrot.lane.b32.xlu0 %v375, 127
        %v574 = vpop.permute.xlu0 %573
        %575 = vrot.lane.b32.xlu0 %v446, 127
        %v576 = vpop.permute.xlu0 %575
        %577 = vrot.lane.b32.xlu0 %v517, 127
        %v578 = vpop.permute.xlu0 %577
        %vm579 = vcmask 1039360
        %v580 = vsel %vm579, %v568, %v570
        %v581 = vsel %vm579, %v570, %v572
        %v582 = vsel %vm579, %v574, %v576
        %v583 = vsel %vm579, %v576, %v578
        %v590 = vadd.f32 %v366, %v580
        %v591 = vadd.f32 %v437, %v581
        %v592 = vadd.f32 %v508, %v572
        %v593 = vadd.f32 %v369, %v582
        %v594 = vadd.f32 %v440, %v583
        %v595 = vadd.f32 %v511, %v578
        %602 = vrot.lane.b32.xlu0 %v378, 126
        %v603 = vpop.permute.xlu0 %602
        %604 = vrot.lane.b32.xlu0 %v449, 126
        %v605 = vpop.permute.xlu0 %604
        %606 = vrot.lane.b32.xlu0 %v520, 126
        %v607 = vpop.permute.xlu0 %606
        %608 = vrot.lane.b32.xlu0 %v381, 126
        %v609 = vpop.permute.xlu0 %608
        %610 = vrot.lane.b32.xlu0 %v452, 126
        %v611 = vpop.permute.xlu0 %610
        %612 = vrot.lane.b32.xlu0 %v523, 126
        %v613 = vpop.permute.xlu0 %612
        %vm614 = vcmask 1031168
        %v615 = vsel %vm614, %v603, %v605
        %v616 = vsel %vm614, %v605, %v607
        %v617 = vsel %vm614, %v609, %v611
        %v618 = vsel %vm614, %v611, %v613
        %v625 = vadd.f32 %v590, %v615
        %v626 = vadd.f32 %v591, %v616
        %v627 = vadd.f32 %v592, %v607
        %v628 = vadd.f32 %v593, %v617
        %v629 = vadd.f32 %v594, %v618
        %v630 = vadd.f32 %v595, %v613
        %637 = vrot.lane.b32.xlu0 %v384, 110
        %v638 = vpop.permute.xlu0 %637
        %639 = vrot.lane.b32.xlu0 %v455, 110
        %v640 = vpop.permute.xlu0 %639
        %641 = vrot.lane.b32.xlu0 %v526, 110
        %v642 = vpop.permute.xlu0 %641
        %643 = vrot.lane.b32.xlu0 %v387, 110
        %v644 = vpop.permute.xlu0 %643
        %645 = vrot.lane.b32.xlu0 %v458, 110
        %v646 = vpop.permute.xlu0 %645
        %647 = vrot.lane.b32.xlu0 %v529, 110
        %v648 = vpop.permute.xlu0 %647
        %vm649 = vcmask 900096
        %v650 = vsel %vm649, %v638, %v640
        %v651 = vsel %vm649, %v640, %v642
        %v652 = vsel %vm649, %v644, %v646
        %v653 = vsel %vm649, %v646, %v648
        %v660 = vadd.f32 %v625, %v650
        %v661 = vadd.f32 %v626, %v651
        %v662 = vadd.f32 %v627, %v642
        %v663 = vadd.f32 %v628, %v652
        %v664 = vadd.f32 %v629, %v653
        %v665 = vadd.f32 %v630, %v648
        %672 = vrot.lane.b32.xlu0 %v390, 109
        %v673 = vpop.permute.xlu0 %672
        %674 = vrot.lane.b32.xlu0 %v461, 109
        %v675 = vpop.permute.xlu0 %674
        %676 = vrot.lane.b32.xlu0 %v532, 109
        %v677 = vpop.permute.xlu0 %676
        %678 = vrot.lane.b32.xlu0 %v393, 109
        %v679 = vpop.permute.xlu0 %678
        %680 = vrot.lane.b32.xlu0 %v464, 109
        %v681 = vpop.permute.xlu0 %680
        %682 = vrot.lane.b32.xlu0 %v535, 109
        %v683 = vpop.permute.xlu0 %682
        %vm684 = vcmask 891904
        %v685 = vsel %vm684, %v673, %v675
        %v686 = vsel %vm684, %v675, %v677
        %v687 = vsel %vm684, %v679, %v681
        %v688 = vsel %vm684, %v681, %v683
        %v695 = vadd.f32 %v660, %v685
        %v696 = vadd.f32 %v661, %v686
        %v697 = vadd.f32 %v662, %v677
        %v698 = vadd.f32 %v663, %v687
        %v699 = vadd.f32 %v664, %v688
        %v700 = vadd.f32 %v665, %v683
        %707 = vrot.lane.b32.xlu0 %v396, 108
        %v708 = vpop.permute.xlu0 %707
        %709 = vrot.lane.b32.xlu0 %v467, 108
        %v710 = vpop.permute.xlu0 %709
        %711 = vrot.lane.b32.xlu0 %v538, 108
        %v712 = vpop.permute.xlu0 %711
        %713 = vrot.lane.b32.xlu0 %v399, 108
        %v714 = vpop.permute.xlu0 %713
        %715 = vrot.lane.b32.xlu0 %v470, 108
        %v716 = vpop.permute.xlu0 %715
        %717 = vrot.lane.b32.xlu0 %v541, 108
        %v718 = vpop.permute.xlu0 %717
        %vm719 = vcmask 883712
        %v720 = vsel %vm719, %v708, %v710
        %v721 = vsel %vm719, %v710, %v712
        %v722 = vsel %vm719, %v714, %v716
        %v723 = vsel %vm719, %v716, %v718
        %v730 = vadd.f32 %v695, %v720
        %v731 = vadd.f32 %v696, %v721
        %v732 = vadd.f32 %v697, %v712
        %v733 = vadd.f32 %v698, %v722
        %v734 = vadd.f32 %v699, %v723
        %v735 = vadd.f32 %v700, %v718
        %742 = vrot.lane.b32.xlu0 %v402, 92
        %v743 = vpop.permute.xlu0 %742
        %744 = vrot.lane.b32.xlu0 %v473, 92
        %v745 = vpop.permute.xlu0 %744
        %746 = vrot.lane.b32.xlu0 %v544, 92
        %v747 = vpop.permute.xlu0 %746
        %748 = vrot.lane.b32.xlu0 %v405, 92
        %v749 = vpop.permute.xlu0 %748
        %750 = vrot.lane.b32.xlu0 %v476, 92
        %v751 = vpop.permute.xlu0 %750
        %752 = vrot.lane.b32.xlu0 %v547, 92
        %v753 = vpop.permute.xlu0 %752
        %vm754 = vcmask 752640
        %v755 = vsel %vm754, %v743, %v745
        %v756 = vsel %vm754, %v745, %v747
        %v757 = vsel %vm754, %v749, %v751
        %v758 = vsel %vm754, %v751, %v753
        %v765 = vadd.f32 %v730, %v755
        %v766 = vadd.f32 %v731, %v756
        %v767 = vadd.f32 %v732, %v747
        %v768 = vadd.f32 %v733, %v757
        %v769 = vadd.f32 %v734, %v758
        %v770 = vadd.f32 %v735, %v753
        %777 = vrot.lane.b32.xlu0 %v408, 91
        %v778 = vpop.permute.xlu0 %777
        %779 = vrot.lane.b32.xlu0 %v479, 91
        %v780 = vpop.permute.xlu0 %779
        %781 = vrot.lane.b32.xlu0 %v550, 91
        %v782 = vpop.permute.xlu0 %781
        %783 = vrot.lane.b32.xlu0 %v411, 91
        %v784 = vpop.permute.xlu0 %783
        %785 = vrot.lane.b32.xlu0 %v482, 91
        %v786 = vpop.permute.xlu0 %785
        %787 = vrot.lane.b32.xlu0 %v553, 91
        %v788 = vpop.permute.xlu0 %787
        %vm789 = vcmask 744448
        %v790 = vsel %vm789, %v778, %v780
        %v791 = vsel %vm789, %v780, %v782
        %v792 = vsel %vm789, %v784, %v786
        %v793 = vsel %vm789, %v786, %v788
        %v800 = vadd.f32 %v765, %v790
        %v801 = vadd.f32 %v766, %v791
        %v802 = vadd.f32 %v767, %v782
        %v803 = vadd.f32 %v768, %v792
        %v804 = vadd.f32 %v769, %v793
        %v805 = vadd.f32 %v770, %v788
        %812 = vrot.lane.b32.xlu0 %v414, 90
        %v813 = vpop.permute.xlu0 %812
        %814 = vrot.lane.b32.xlu0 %v485, 90
        %v815 = vpop.permute.xlu0 %814
        %816 = vrot.lane.b32.xlu0 %v556, 90
        %v817 = vpop.permute.xlu0 %816
        %818 = vrot.lane.b32.xlu0 %v417, 90
        %v819 = vpop.permute.xlu0 %818
        %820 = vrot.lane.b32.xlu0 %v488, 90
        %v821 = vpop.permute.xlu0 %820
        %822 = vrot.lane.b32.xlu0 %v559, 90
        %v823 = vpop.permute.xlu0 %822
        %vm824 = vcmask 736256
        %v825 = vsel %vm824, %v813, %v815
        %v826 = vsel %vm824, %v815, %v817
        %v827 = vsel %vm824, %v819, %v821
        %v828 = vsel %vm824, %v821, %v823
        %v835 = vadd.f32 %v800, %v825
        %v836 = vadd.f32 %v801, %v826
        %v837 = vadd.f32 %v802, %v817
        %v838 = vadd.f32 %v803, %v827
        %v839 = vadd.f32 %v804, %v828
        %v840 = vadd.f32 %v805, %v823
        %842 = vset.pattern.permute.xlu0 0
        %843 = vperm.xlu0 %842, %v272
        %v844 = vpop.permute.xlu0 %843
        %847 = vset.pattern.permute.xlu0 0
        %848 = vperm.xlu0 %847, %v273
        %v849 = vpop.permute.xlu0 %848
        %v851 = vadd.f32 %v835, %v844
        %v852 = vadd.f32 %v836, %v844
        %v853 = vadd.f32 %v837, %v844
        %v854 = vadd.f32 %v838, %v849
        %v855 = vadd.f32 %v839, %v849
        %v856 = vadd.f32 %v840, %v849
        %v857 = vmax.f32 %v851, 0.0
        %v858 = vmax.f32 %v852, 0.0
        %v859 = vmax.f32 %v853, 0.0
        %v860 = vmax.f32 %v854, 0.0
        %v861 = vmax.f32 %v855, 0.0
        %v862 = vmax.f32 %v856, 0.0
        %v864 = vperm.slane %v275, 0
        %v865 = vperm.slane %v275, 1
        %v866 = vperm.slane %v275, 2
        %v870 = vmul.f32 %v864, %v857
        %v871 = vmul.f32 %v865, %v858
        %v872 = vmul.f32 %v866, %v859
        %v873 = vmul.f32 %v864, %v860
        %v874 = vmul.f32 %v865, %v861
        %v875 = vmul.f32 %v866, %v862
        %vm876 = vcmask 130048
        %v878 = vsel %vm876, %v270, 0
        %v881 = vsel %vm876, %v271, 0
        %883 = vmatpush.msra.mxu0 0.0
        %884 = vmatpush.msra.mxu0 0.0
        %885 = vmatpush.msra.mxu0 0.0
        %886 = vmatpush.msra.mxu0 0.0
        %887 = vmatpush.msra.mxu0 0.0
        %888 = vmatpush.msra.mxu0 0.0
        %889 = vmatpush.msra.mxu0 0.0
        %890 = vmatpush.msra.mxu0 0.0
        %891 = vmatpush.msra.mxu0 0.0
        %892 = vmatpush.msra.mxu0 0.0
        %893 = vmatpush.msra.mxu0 0.0
        %894 = vmatpush.msra.mxu0 0.0
        %895 = vmatpush.msra.mxu0 0.0
        %896 = vmatpush.msra.mxu0 0.0
        %897 = vmatpush.msra.mxu0 %v873
        %898 = vmatpush.msra.mxu0 %v870
        %899 = vmatmul.f32.gmra.mxu0 %v878
        %v900 = vpop.f32.mrf.mxu0
        %v901 = vadd.f32 0.0, %v900
        %902 = vmatmul.f32.gmra.mxu0 %v881
        %v903 = vpop.f32.mrf.mxu0
        %v904 = vadd.f32 0.0, %v903
        %905 = vdwg.mxu0
        %906 = vmatpush.msra.mxu0 0.0
        %907 = vmatpush.msra.mxu0 0.0
        %908 = vmatpush.msra.mxu0 0.0
        %909 = vmatpush.msra.mxu0 0.0
        %910 = vmatpush.msra.mxu0 0.0
        %911 = vmatpush.msra.mxu0 0.0
        %912 = vmatpush.msra.mxu0 0.0
        %913 = vmatpush.msra.mxu0 0.0
        %914 = vmatpush.msra.mxu0 0.0
        %915 = vmatpush.msra.mxu0 0.0
        %916 = vmatpush.msra.mxu0 0.0
        %917 = vmatpush.msra.mxu0 0.0
        %918 = vmatpush.msra.mxu0 0.0
        %919 = vmatpush.msra.mxu0 0.0
        %920 = vmatpush.msra.mxu0 %v874
        %921 = vmatpush.msra.mxu0 %v871
        %922 = vmatmul.f32.gmra.mxu0 %v878
        %v923 = vpop.f32.mrf.mxu0
        %v924 = vadd.f32 0.0, %v923
        %925 = vmatmul.f32.gmra.mxu0 %v881
        %v926 = vpop.f32.mrf.mxu0
        %v927 = vadd.f32 0.0, %v926
        %928 = vdwg.mxu0
        %929 = vmatpush.msra.mxu0 0.0
        %930 = vmatpush.msra.mxu0 0.0
        %931 = vmatpush.msra.mxu0 0.0
        %932 = vmatpush.msra.mxu0 0.0
        %933 = vmatpush.msra.mxu0 0.0
        %934 = vmatpush.msra.mxu0 0.0
        %935 = vmatpush.msra.mxu0 0.0
        %936 = vmatpush.msra.mxu0 0.0
        %937 = vmatpush.msra.mxu0 0.0
        %938 = vmatpush.msra.mxu0 0.0
        %939 = vmatpush.msra.mxu0 0.0
        %940 = vmatpush.msra.mxu0 0.0
        %941 = vmatpush.msra.mxu0 0.0
        %942 = vmatpush.msra.mxu0 0.0
        %943 = vmatpush.msra.mxu0 %v875
        %944 = vmatpush.msra.mxu0 %v872
        %945 = vmatmul.f32.gmra.mxu0 %v878
        %v946 = vpop.f32.mrf.mxu0
        %v947 = vadd.f32 0.0, %v946
        %948 = vmatmul.f32.gmra.mxu0 %v881
        %v949 = vpop.f32.mrf.mxu0
        %v950 = vadd.f32 0.0, %v949
        %951 = vdwg.mxu0
        %v955 = vrot.slane %v901, 1
        %v956 = vrot.slane %v924, 1
        %v957 = vrot.slane %v947, 1
        %958 = vrot.lane.b32.xlu0 %v955, 127
        %v959 = vpop.permute.xlu0 %958
        %960 = vrot.lane.b32.xlu0 %v956, 127
        %v961 = vpop.permute.xlu0 %960
        %962 = vrot.lane.b32.xlu0 %v957, 127
        %v963 = vpop.permute.xlu0 %962
        %v964 = vsel %vm579, %v959, %v961
        %v965 = vsel %vm579, %v961, %v963
        %v969 = vadd.f32 %v901, %v964
        %v970 = vadd.f32 %v924, %v965
        %v971 = vadd.f32 %v947, %v963
        %v972 = vrot.slane %v901, 2
        %v973 = vrot.slane %v924, 2
        %v974 = vrot.slane %v947, 2
        %975 = vrot.lane.b32.xlu0 %v972, 126
        %v976 = vpop.permute.xlu0 %975
        %977 = vrot.lane.b32.xlu0 %v973, 126
        %v978 = vpop.permute.xlu0 %977
        %979 = vrot.lane.b32.xlu0 %v974, 126
        %v980 = vpop.permute.xlu0 %979
        %v981 = vsel %vm614, %v976, %v978
        %v982 = vsel %vm614, %v978, %v980
        %v986 = vadd.f32 %v969, %v981
        %v987 = vadd.f32 %v970, %v982
        %v988 = vadd.f32 %v971, %v980
        %v989 = vrot.slane %v901, 3
        %v990 = vrot.slane %v924, 3
        %v991 = vrot.slane %v947, 3
        %992 = vrot.lane.b32.xlu0 %v989, 110
        %v993 = vpop.permute.xlu0 %992
        %994 = vrot.lane.b32.xlu0 %v990, 110
        %v995 = vpop.permute.xlu0 %994
        %996 = vrot.lane.b32.xlu0 %v991, 110
        %v997 = vpop.permute.xlu0 %996
        %v998 = vsel %vm649, %v993, %v995
        %v999 = vsel %vm649, %v995, %v997
        %v1003 = vadd.f32 %v986, %v998
        %v1004 = vadd.f32 %v987, %v999
        %v1005 = vadd.f32 %v988, %v997
        %v1006 = vrot.slane %v901, 4
        %v1007 = vrot.slane %v924, 4
        %v1008 = vrot.slane %v947, 4
        %1009 = vrot.lane.b32.xlu0 %v1006, 109
        %v1010 = vpop.permute.xlu0 %1009
        %1011 = vrot.lane.b32.xlu0 %v1007, 109
        %v1012 = vpop.permute.xlu0 %1011
        %1013 = vrot.lane.b32.xlu0 %v1008, 109
        %v1014 = vpop.permute.xlu0 %1013
        %v1015 = vsel %vm684, %v1010, %v1012
        %v1016 = vsel %vm684, %v1012, %v1014
        %v1020 = vadd.f32 %v1003, %v1015
        %v1021 = vadd.f32 %v1004, %v1016
        %v1022 = vadd.f32 %v1005, %v1014
        %v1023 = vrot.slane %v901, 5
        %v1024 = vrot.slane %v924, 5
        %v1025 = vrot.slane %v947, 5
        %1026 = vrot.lane.b32.xlu0 %v1023, 108
        %v1027 = vpop.permute.xlu0 %1026
        %1028 = vrot.lane.b32.xlu0 %v1024, 108
        %v1029 = vpop.permute.xlu0 %1028
        %1030 = vrot.lane.b32.xlu0 %v1025, 108
        %v1031 = vpop.permute.xlu0 %1030
        %v1032 = vsel %vm719, %v1027, %v1029
        %v1033 = vsel %vm719, %v1029, %v1031
        %v1037 = vadd.f32 %v1020, %v1032
        %v1038 = vadd.f32 %v1021, %v1033
        %v1039 = vadd.f32 %v1022, %v1031
        %v1040 = vrot.slane %v901, 6
        %v1041 = vrot.slane %v924, 6
        %v1042 = vrot.slane %v947, 6
        %1043 = vrot.lane.b32.xlu0 %v1040, 92
        %v1044 = vpop.permute.xlu0 %1043
        %1045 = vrot.lane.b32.xlu0 %v1041, 92
        %v1046 = vpop.permute.xlu0 %1045
        %1047 = vrot.lane.b32.xlu0 %v1042, 92
        %v1048 = vpop.permute.xlu0 %1047
        %v1049 = vsel %vm754, %v1044, %v1046
        %v1050 = vsel %vm754, %v1046, %v1048
        %v1054 = vadd.f32 %v1037, %v1049
        %v1055 = vadd.f32 %v1038, %v1050
        %v1056 = vadd.f32 %v1039, %v1048
        %v1057 = vrot.slane %v901, 7
        %v1058 = vrot.slane %v924, 7
        %v1059 = vrot.slane %v947, 7
        %1060 = vrot.lane.b32.xlu0 %v1057, 91
        %v1061 = vpop.permute.xlu0 %1060
        %1062 = vrot.lane.b32.xlu0 %v1058, 91
        %v1063 = vpop.permute.xlu0 %1062
        %1064 = vrot.lane.b32.xlu0 %v1059, 91
        %v1065 = vpop.permute.xlu0 %1064
        %v1066 = vsel %vm789, %v1061, %v1063
        %v1067 = vsel %vm789, %v1063, %v1065
        %v1071 = vadd.f32 %v1054, %v1066
        %v1072 = vadd.f32 %v1055, %v1067
        %v1073 = vadd.f32 %v1056, %v1065
        %1077 = vrot.lane.b32.xlu0 %v904, 90
        %v1078 = vpop.permute.xlu0 %1077
        %1079 = vrot.lane.b32.xlu0 %v927, 90
        %v1080 = vpop.permute.xlu0 %1079
        %1081 = vrot.lane.b32.xlu0 %v950, 90
        %v1082 = vpop.permute.xlu0 %1081
        %v1083 = vsel %vm824, %v1078, %v1080
        %v1084 = vsel %vm824, %v1080, %v1082
        %v1088 = vadd.f32 %v1071, %v1083
        %v1089 = vadd.f32 %v1072, %v1084
        %v1090 = vadd.f32 %v1073, %v1082
        %1092 = vset.pattern.permute.xlu0 0
        %1093 = vperm.xlu0 %1092, %v274
        %v1094 = vpop.permute.xlu0 %1093
        %v1096 = vperm.slane %v1094, 0
        %v1097 = vadd.f32 %v1088, %v1096
        %v1098 = vadd.f32 %v1089, %v1096
        %v1099 = vadd.f32 %v1090, %v1096
        %v1100 = vxor.u32 %v1097, 2147483648
        %v1101 = vxor.u32 %v1098, 2147483648
        %v1102 = vxor.u32 %v1099, 2147483648
        %v1103 = vmul.f32 %v1100, 1.442695
        %v1104 = vpow.pop %v1103
        %v1105 = vmul.f32 %v1101, 1.442695
        %v1106 = vpow.pop %v1105
        %v1107 = vmul.f32 %v1102, 1.442695
        %v1108 = vpow.pop %v1107
        %v1109 = vadd.f32 %v1104, 1.0
        %v1110 = vadd.f32 %v1106, 1.0
        %v1111 = vadd.f32 %v1108, 1.0
        %v1112 = vrcp.pop %v1109
        %v1113 = vmul.f32 %v1109, %v1112
        %v1114 = vsub.f32 1.0, %v1113
        %v1115 = vmul.f32 %v1112, %v1114
        %v1116 = vadd.f32 %v1112, %v1115
        %vm1117 = vweird.f32 %v1109
        %vm1118 = vweird.f32 %v1112
        %vm1119 = vmor %vm1117, %vm1118
        %v1120 = vsel %vm1119, %v1112, %v1116
        %v1121 = vand.u32 2147483647, %v1109
        %vm1122 = vcmp.eq.f32.partialorder %v1121, 8.507059e+37
        %v1123 = vand.u32 %v1109, 2147483648
        %v1124 = vor.u32 1.1754944e-38, %v1123
        %v1125 = vsel %vm1122, %v1124, %v1120
        %v1126 = vmul.f32 1.0, %v1125
        %v1127 = vrcp.pop %v1110
        %v1128 = vmul.f32 %v1110, %v1127
        %v1129 = vsub.f32 1.0, %v1128
        %v1130 = vmul.f32 %v1127, %v1129
        %v1131 = vadd.f32 %v1127, %v1130
        %vm1132 = vweird.f32 %v1110
        %vm1133 = vweird.f32 %v1127
        %vm1134 = vmor %vm1132, %vm1133
        %v1135 = vsel %vm1134, %v1127, %v1131
        %v1136 = vand.u32 2147483647, %v1110
        %vm1137 = vcmp.eq.f32.partialorder %v1136, 8.507059e+37
        %v1138 = vand.u32 %v1110, 2147483648
        %v1139 = vor.u32 1.1754944e-38, %v1138
        %v1140 = vsel %vm1137, %v1139, %v1135
        %v1141 = vmul.f32 1.0, %v1140
        %v1142 = vrcp.pop %v1111
        %v1143 = vmul.f32 %v1111, %v1142
        %v1144 = vsub.f32 1.0, %v1143
        %v1145 = vmul.f32 %v1142, %v1144
        %v1146 = vadd.f32 %v1142, %v1145
        %vm1147 = vweird.f32 %v1111
        %vm1148 = vweird.f32 %v1142
        %vm1149 = vmor %vm1147, %vm1148
        %v1150 = vsel %vm1149, %v1142, %v1146
        %v1151 = vand.u32 2147483647, %v1111
        %vm1152 = vcmp.eq.f32.partialorder %v1151, 8.507059e+37
        %v1153 = vand.u32 %v1111, 2147483648
        %v1154 = vor.u32 1.1754944e-38, %v1153
        %v1155 = vsel %vm1152, %v1154, %v1150
        %v1156 = vmul.f32 1.0, %v1155
        %v1160 = vrot.slane %v1141, 7
        %v1161 = vrot.slane %v1156, 6
        %vm1162 = vcmask 1040384
        %v1163 = vsel %vm1162, %v1126, %v1160
        %vm1164 = vcmask 1041408
        %v1165 = vsel %vm1164, %v1163, %v1161
        %v1167 = vlaneseq
        %vm1168 = vcmp.ge.s32.totalorder %v1167, 0
        %vm1169 = vcmp.lt.s32.totalorder %v1167, 286
        %vm1170 = vmand %vm1168, %vm1169
        %1171 = vst.msk [vmem:[%s246] sm:$0x7] %vm1170, %v1165
        %s1172 = sand.u32 %s161, 1
        %s1173 = scalar_lea.sflag [#allocation4], %s1172
        %s1174 = sand.u32 %s161, 1
        %s1175 = smul.addr %s1174, 3
        %s1176 = scalar_lea.vmem [#allocation3], %s1175
        // Predicated region
        $region45: #{tpu_custom_call.1} parent=43 // pred_check
          %p1177 = pneg %p171
        $region46: #{tpu_custom_call.1} parent=43 // pred_check_branch
          %1179 = sbr.rel (%p1177) target = $region48
        $region47: #{tpu_custom_call.1} parent=43 // pred_region
          %1181 = vsyncadd %s1173, 0
          %s1182 = smul.addr %s22, 3
          %s1183 = scalar_lea.hbm %s6, %s1182
          %s1185 = sshll.u32 %s1176, 4
          %s1186 = int_to_ptr.vmem [resolvable:$true] %s1185
          %s1187 = sshll.u32 %s1183, 4
          %s1188 = int_to_ptr.hbm [resolvable:$true] %s1187
          %1190 = dma.vmem_to_hbm [thread:$0]  %s1186, 48, %s1188, %s1173
        $region48: #{tpu_custom_call.1} parent=43 // pred_fallthru
          _
      $region44: #{tpu_custom_call.1} parent=5 // pred_fallthru
        _
      %p1191 = scmp.le.s32.totalorder 2, %s17
      // Predicated region
      $region49: #{tpu_custom_call.1} parent=5 // pred_check
        %p1192 = pneg %p1191
      $region50: #{tpu_custom_call.1} parent=5 // pred_check_branch
        %1194 = sbr.rel (%p1192) target = $region52
      $region51: #{tpu_custom_call.1} parent=5 // pred_region
        %s1195 = ssub.s32 %s17, 2
        // Predicated region
        $region53: #{tpu_custom_call.1} parent=51 // pred_check
          %p1196 = pneg %p177
        $region54: #{tpu_custom_call.1} parent=51 // pred_check_branch
          %1198 = sbr.rel (%p1196) target = $region56
        $region55: #{tpu_custom_call.1} parent=51 // pred_region
          %s1199 = sand.u32 %s162, 1
          %s1200 = scalar_lea.sflag [#allocation4], %s1199
          %s1201 = sand.u32 %s162, 1
          %s1202 = smul.addr %s1201, 3
          %s1203 = scalar_lea.vmem [#allocation3], %s1202
          %1205 = dma.done %s1200, 48
        $region56: #{tpu_custom_call.1} parent=51 // pred_fallthru
          _
      $region52: #{tpu_custom_call.1} parent=5 // pred_fallthru
        _
    $region6: #{tpu_custom_call.1} parent=1 // loop_footer
      %s21 = sadd.s32 1, %s17
    $region7: #{tpu_custom_call.1} parent=1 // loop_footer_branch
      %16 = sbr.rel target = $region3
    $region8: #{tpu_custom_call.1} parent=1 // loop_exit
      _
    %1206 = vsyncpa [#allocation4], 1
    %s1207 = scalar_lea.sflag [#allocation4], 1
    %1208 = vsyncpa %s1207, 1

</llo_original>
